<compile_context>
chip_gen: v7x
topology: tpu7x:2x2x1
jax: 0.10.0
libtpu: 0.0.40
codegen_flags: <defaults>
</compile_context>

<pallas_src>
import functools

import jax
import jax.numpy as jnp
from jax.experimental import pallas as pl
from jax.experimental.pallas import tpu as pltpu


LANE = 128
# Optional v6e/v7x micro-opt: feed the MXU bf16 operands (f32 accumulation).
# Left off by default to preserve the f32 reference tolerance (1e-5).
MXU_BF16 = False


def _round_up(a, b):
    return (a + b - 1) // b * b


# ----------------------------- kernel ------------------------------------ #

def realnvp_kernel(
    lower_ref, upper_ref,                       # (half, Bt) activations
    w1_ref, b1_ref, w2_ref, b2_ref, w3_ref, b3_ref,   # packed params (2, ...)
    lower_out_ref, upper_out_ref, logdet_ref,   # outputs
    *, half,
):
    lower_t = lower_ref[...]                    # (half, Bt)
    upper_t = upper_ref[...]                    # (half, Bt)

    def fused_fcnn(x_t, idx):
        """Fused t/s FCNN in transposed layout; returns (t, s)."""
        w1 = w1_ref[idx]                        # (2H, half)
        w2 = w2_ref[idx]                        # (2H, 2H) block-diagonal
        w3 = w3_ref[idx]                        # (2*half, 2H) block-diagonal
        if MXU_BF16:
            w1 = w1.astype(jnp.bfloat16)
            w2 = w2.astype(jnp.bfloat16)
            w3 = w3.astype(jnp.bfloat16)
            x_t = x_t.astype(jnp.bfloat16)
        h = jnp.tanh(jnp.dot(w1, x_t, preferred_element_type=jnp.float32)
                     + b1_ref[idx])
        if MXU_BF16:
            h = h.astype(jnp.bfloat16)
        h = jnp.tanh(jnp.dot(w2, h, preferred_element_type=jnp.float32)
                     + b2_ref[idx])
        if MXU_BF16:
            h = h.astype(jnp.bfloat16)
        out = (jnp.dot(w3, h, preferred_element_type=jnp.float32)
               + b3_ref[idx])                   # (2*half, Bt)
        return out[:half, :], out[half:, :]     # sublane split: t, s

    t1, s1 = fused_fcnn(lower_t, 0)
    new_upper = t1 + upper_t * jnp.exp(s1)

    t2, s2 = fused_fcnn(new_upper, 1)
    new_lower = t2 + lower_t * jnp.exp(s2)

    lower_out_ref[...] = new_lower
    upper_out_ref[...] = new_upper
    # lane-dense (1, Bt) logdet row
    logdet_ref[...] = (jnp.sum(s1, axis=0, keepdims=True)
                       + jnp.sum(s2, axis=0, keepdims=True))


# ----------------------------- wrapper ------------------------------------ #

def _pack_coupling(t_params, s_params):
    """Fuse one (t, s) pair of FCNNs into 3 transposed, block-diag layers."""
    tw1, tb1, tw2, tb2, tw3, tb3 = t_params
    sw1, sb1, sw2, sb2, sw3, sb3 = s_params
    half, hidden = tw1.shape

    w1 = jnp.concatenate([tw1.T, sw1.T], axis=0)            # (2H, half)
    b1 = jnp.concatenate([tb1.T, sb1.T], axis=0)            # (2H, 1)

    zh = jnp.zeros((hidden, hidden), jnp.float32)
    w2 = jnp.concatenate(
        [jnp.concatenate([tw2.T, zh], axis=1),
         jnp.concatenate([zh, sw2.T], axis=1)], axis=0)      # (2H, 2H)
    b2 = jnp.concatenate([tb2.T, sb2.T], axis=0)            # (2H, 1)

    zo = jnp.zeros((half, hidden), jnp.float32)
    w3 = jnp.concatenate(
        [jnp.concatenate([tw3.T, zo], axis=1),
         jnp.concatenate([zo, sw3.T], axis=1)], axis=0)      # (2*half, 2H)
    b3 = jnp.concatenate([tb3.T, sb3.T], axis=0)            # (2*half, 1)
    return w1, b1, w2, b2, w3, b3


def realnvp_forward(x, params):
    """x: (B, dim) float32.  params: dict of 4 FCNNs, 6 arrays each."""
    B, dim = x.shape
    assert dim % 2 == 0
    half = dim // 2

    # --- wrapper-side parameter packing: 24 arrays -> 6 stacked arrays ---
    c1 = _pack_coupling(params["t1"], params["s1"])
    c2 = _pack_coupling(params["t2"], params["s2"])
    packed = [jnp.stack([a, b], axis=0) for a, b in zip(c1, c2)]
    # packed = [w1(2,2H,half), b1(2,2H,1), w2(2,2H,2H), b2(2,2H,1),
    #           w3(2,2*half,2H), b3(2,2*half,1)]

    # --- transpose + pad so batch rides the 128-lane axis ---
    b_tile = min(512, _round_up(B, LANE))
    b_pad = _round_up(B, b_tile)
    lower_t = x[:, :half].T                                  # (half, B)
    upper_t = x[:, half:].T
    if b_pad != B:
        lower_t = jnp.pad(lower_t, ((0, 0), (0, b_pad - B)))
        upper_t = jnp.pad(upper_t, ((0, 0), (0, b_pad - B)))

    grid = (b_pad // b_tile,)
    act_spec = pl.BlockSpec((half, b_tile), lambda i: (0, i))
    const3 = lambda i: (0, 0, 0)   # weights resident across batch tiles
    in_specs = [act_spec, act_spec] + [
        pl.BlockSpec(p.shape, const3) for p in packed
    ]
    out_specs = (
        act_spec,
        act_spec,
        pl.BlockSpec((1, b_tile), lambda i: (0, i)),
    )
    out_shape = (
        jax.ShapeDtypeStruct((half, b_pad), jnp.float32),
        jax.ShapeDtypeStruct((half, b_pad), jnp.float32),
        jax.ShapeDtypeStruct((1, b_pad), jnp.float32),
    )

    fn = pl.pallas_call(
        functools.partial(realnvp_kernel, half=half),
        grid=grid,
        in_specs=in_specs,
        out_specs=out_specs,
        out_shape=out_shape,
        compiler_params=pltpu.CompilerParams(
            dimension_semantics=("parallel",)),
    )
    lower_out, upper_out, logdet = fn(lower_t, upper_t, *packed)

    # layout plumbing back to the PyTorch convention
    z = jnp.concatenate([lower_out[:, :B].T, upper_out[:, :B].T], axis=1)
    return z, logdet[0, :B]


# ------------------------- reference (pure JAX) ---------------------------- #

def _fcnn_ref(x, p):
    w1, b1, w2, b2, w3, b3 = p
    h = jnp.tanh(x @ w1 + b1)
    h = jnp.tanh(h @ w2 + b2)
    return h @ w3 + b3


def realnvp_forward_ref(x, params):
    half = x.shape[1] // 2
    lower, upper = x[:, :half], x[:, half:]
    t1 = _fcnn_ref(lower, params["t1"])
    s1 = _fcnn_ref(lower, params["s1"])
    upper = t1 + upper * jnp.exp(s1)
    t2 = _fcnn_ref(upper, params["t2"])
    s2 = _fcnn_ref(upper, params["s2"])
    lower = t2 + lower * jnp.exp(s2)
    z = jnp.concatenate([lower, upper], axis=1)
    logdet = jnp.sum(s1, axis=1) + jnp.sum(s2, axis=1)
    return z, logdet


# ------------------------------ param init -------------------------------- #

def init_params(key, dim, hidden_dim):
    half = dim // 2
    in_dim = half          # cond_dim=None
    params = {}
    for net in ("t1", "s1", "t2", "s2"):
        key, k1, k2, k3 = jax.random.split(key, 4)

        def lin(k, fi, fo):
            kw, kb = jax.random.split(k)
            bound = 1.0 / jnp.sqrt(fi)
            w = jax.random.uniform(kw, (fi, fo), jnp.float32, -bound, bound)
            b = jax.random.uniform(kb, (1, fo), jnp.float32, -bound, bound)
            return w, b

        w1, b1 = lin(k1, in_dim, hidden_dim)
        w2, b2 = lin(k2, hidden_dim, hidden_dim)
        w3, b3 = lin(k3, hidden_dim, half)
        params[net] = (w1, b1, w2, b2, w3, b3)
    return params


# --------------------------------- main ------------------------------------ #

if __name__ == "__main__":
    B, DIM, HIDDEN = 8, 8, 32

    key = jax.random.PRNGKey(0)
    key, kx, kp = jax.random.split(key, 3)
    x = jax.random.normal(kx, (B, DIM), jnp.float32)
    params = init_params(kp, DIM, HIDDEN)

    z, logdet = realnvp_forward(x, params)
    jax.block_until_ready((z, logdet))

    z_ref, logdet_ref = realnvp_forward_ref(x, params)
    assert jnp.allclose(z, z_ref, atol=1e-5, rtol=1e-5), "z mismatch"
    assert jnp.allclose(logdet, logdet_ref, atol=1e-5, rtol=1e-5), "logdet mismatch"

    print("KERNEL_OK")
</pallas_src>

<mosaic_0001>
module attributes {stable_mosaic.version = 11 : i64} {
  func.func @realnvp_kernel(%arg0: i32, %arg1: memref<4x128xf32, #tpu.memory_space<vmem>>, %arg2: memref<4x128xf32, #tpu.memory_space<vmem>>, %arg3: memref<2x64x4xf32, #tpu.memory_space<vmem>>, %arg4: memref<2x64x1xf32, #tpu.memory_space<vmem>>, %arg5: memref<2x64x64xf32, #tpu.memory_space<vmem>>, %arg6: memref<2x64x1xf32, #tpu.memory_space<vmem>>, %arg7: memref<2x8x64xf32, #tpu.memory_space<vmem>>, %arg8: memref<2x8x1xf32, #tpu.memory_space<vmem>>, %arg9: memref<4x128xf32, #tpu.memory_space<vmem>>, %arg10: memref<4x128xf32, #tpu.memory_space<vmem>>, %arg11: memref<1x128xf32, #tpu.memory_space<vmem>>) attributes {dimension_semantics = [#tpu.dimension_semantics<parallel>], iteration_bounds = array<i64: 1>, scalar_prefetch = 0 : i64, scratch_operands = 0 : i64, tpu.core_type = #tpu.core_type<tc>, window_params = [{transform_indices = @transform_0, window_bounds = array<i64: 4, 128>}, {transform_indices = @transform_1, window_bounds = array<i64: 4, 128>}, {pipeline_mode = #tpu.pipeline_mode<synchronous>, transform_indices = @transform_2, window_bounds = array<i64: 2, 64, 4>}, {pipeline_mode = #tpu.pipeline_mode<synchronous>, transform_indices = @transform_3, window_bounds = array<i64: 2, 64, 1>}, {pipeline_mode = #tpu.pipeline_mode<synchronous>, transform_indices = @transform_4, window_bounds = array<i64: 2, 64, 64>}, {pipeline_mode = #tpu.pipeline_mode<synchronous>, transform_indices = @transform_5, window_bounds = array<i64: 2, 64, 1>}, {pipeline_mode = #tpu.pipeline_mode<synchronous>, transform_indices = @transform_6, window_bounds = array<i64: 2, 8, 64>}, {pipeline_mode = #tpu.pipeline_mode<synchronous>, transform_indices = @transform_7, window_bounds = array<i64: 2, 8, 1>}, {transform_indices = @transform_8, window_bounds = array<i64: 4, 128>}, {transform_indices = @transform_9, window_bounds = array<i64: 4, 128>}, {transform_indices = @transform_10, window_bounds = array<i64: 1, 128>}]} {
    %c0 = arith.constant 0 : index
    %c0_0 = arith.constant 0 : index
    %0 = vector.load %arg1[%c0, %c0_0] : memref<4x128xf32, #tpu.memory_space<vmem>>, vector<4x128xf32>
    %c0_1 = arith.constant 0 : index
    %c0_2 = arith.constant 0 : index
    %1 = vector.load %arg2[%c0_1, %c0_2] : memref<4x128xf32, #tpu.memory_space<vmem>>, vector<4x128xf32>
    %c0_3 = arith.constant 0 : index
    %c0_4 = arith.constant 0 : index
    %c0_5 = arith.constant 0 : index
    %2 = vector.load %arg3[%c0_3, %c0_4, %c0_5] : memref<2x64x4xf32, #tpu.memory_space<vmem>>, vector<1x64x4xf32>
    %3 = vector.shape_cast %2 : vector<1x64x4xf32> to vector<64x4xf32>
    %c0_6 = arith.constant 0 : index
    %c0_7 = arith.constant 0 : index
    %c0_8 = arith.constant 0 : index
    %4 = vector.load %arg5[%c0_6, %c0_7, %c0_8] : memref<2x64x64xf32, #tpu.memory_space<vmem>>, vector<1x64x64xf32>
    %5 = vector.shape_cast %4 : vector<1x64x64xf32> to vector<64x64xf32>
    %c0_9 = arith.constant 0 : index
    %c0_10 = arith.constant 0 : index
    %c0_11 = arith.constant 0 : index
    %6 = vector.load %arg7[%c0_9, %c0_10, %c0_11] : memref<2x8x64xf32, #tpu.memory_space<vmem>>, vector<1x8x64xf32>
    %7 = vector.shape_cast %6 : vector<1x8x64xf32> to vector<8x64xf32>
    %cst = arith.constant dense<0.000000e+00> : vector<64x128xf32>
    %8 = tpu.matmul %3, %0, %cst {dimension_numbers = #tpu.dot_dimension_numbers<[1], [0], [0], [1], [0, 0, 1, 1], [], []>} : vector<64x4xf32>, vector<4x128xf32>, vector<64x128xf32> -> vector<64x128xf32>
    %c0_12 = arith.constant 0 : index
    %c0_13 = arith.constant 0 : index
    %c0_14 = arith.constant 0 : index
    %9 = vector.load %arg4[%c0_12, %c0_13, %c0_14] : memref<2x64x1xf32, #tpu.memory_space<vmem>>, vector<1x64x1xf32>
    %10 = vector.shape_cast %9 : vector<1x64x1xf32> to vector<64x1xf32>
    %11 = vector.broadcast %10 : vector<64x1xf32> to vector<64x128xf32>
    %12 = arith.addf %8, %11 : vector<64x128xf32>
    %13 = math.tanh %12 : vector<64x128xf32>
    %cst_15 = arith.constant dense<0.000000e+00> : vector<64x128xf32>
    %14 = tpu.matmul %5, %13, %cst_15 {dimension_numbers = #tpu.dot_dimension_numbers<[1], [0], [0], [1], [0, 0, 1, 1], [], []>} : vector<64x64xf32>, vector<64x128xf32>, vector<64x128xf32> -> vector<64x128xf32>
    %c0_16 = arith.constant 0 : index
    %c0_17 = arith.constant 0 : index
    %c0_18 = arith.constant 0 : index
    %15 = vector.load %arg6[%c0_16, %c0_17, %c0_18] : memref<2x64x1xf32, #tpu.memory_space<vmem>>, vector<1x64x1xf32>
    %16 = vector.shape_cast %15 : vector<1x64x1xf32> to vector<64x1xf32>
    %17 = vector.broadcast %16 : vector<64x1xf32> to vector<64x128xf32>
    %18 = arith.addf %14, %17 : vector<64x128xf32>
    %19 = math.tanh %18 : vector<64x128xf32>
    %cst_19 = arith.constant dense<0.000000e+00> : vector<8x128xf32>
    %20 = tpu.matmul %7, %19, %cst_19 {dimension_numbers = #tpu.dot_dimension_numbers<[1], [0], [0], [1], [0, 0, 1, 1], [], []>} : vector<8x64xf32>, vector<64x128xf32>, vector<8x128xf32> -> vector<8x128xf32>
    %c0_20 = arith.constant 0 : index
    %c0_21 = arith.constant 0 : index
    %c0_22 = arith.constant 0 : index
    %21 = vector.load %arg8[%c0_20, %c0_21, %c0_22] : memref<2x8x1xf32, #tpu.memory_space<vmem>>, vector<1x8x1xf32>
    %22 = vector.shape_cast %21 : vector<1x8x1xf32> to vector<8x1xf32>
    %23 = vector.broadcast %22 : vector<8x1xf32> to vector<8x128xf32>
    %24 = arith.addf %20, %23 : vector<8x128xf32>
    %25 = vector.extract_strided_slice %24 {offsets = [0, 0], sizes = [4, 128], strides = [1, 1]} : vector<8x128xf32> to vector<4x128xf32>
    %26 = vector.extract_strided_slice %24 {offsets = [4, 0], sizes = [4, 128], strides = [1, 1]} : vector<8x128xf32> to vector<4x128xf32>
    %27 = math.exp %26 : vector<4x128xf32>
    %28 = arith.mulf %1, %27 : vector<4x128xf32>
    %29 = arith.addf %25, %28 : vector<4x128xf32>
    %c1 = arith.constant 1 : index
    %c0_23 = arith.constant 0 : index
    %c0_24 = arith.constant 0 : index
    %30 = vector.load %arg3[%c1, %c0_23, %c0_24] : memref<2x64x4xf32, #tpu.memory_space<vmem>>, vector<1x64x4xf32>
    %31 = vector.shape_cast %30 : vector<1x64x4xf32> to vector<64x4xf32>
    %c1_25 = arith.constant 1 : index
    %c0_26 = arith.constant 0 : index
    %c0_27 = arith.constant 0 : index
    %32 = vector.load %arg5[%c1_25, %c0_26, %c0_27] : memref<2x64x64xf32, #tpu.memory_space<vmem>>, vector<1x64x64xf32>
    %33 = vector.shape_cast %32 : vector<1x64x64xf32> to vector<64x64xf32>
    %c1_28 = arith.constant 1 : index
    %c0_29 = arith.constant 0 : index
    %c0_30 = arith.constant 0 : index
    %34 = vector.load %arg7[%c1_28, %c0_29, %c0_30] : memref<2x8x64xf32, #tpu.memory_space<vmem>>, vector<1x8x64xf32>
    %35 = vector.shape_cast %34 : vector<1x8x64xf32> to vector<8x64xf32>
    %cst_31 = arith.constant dense<0.000000e+00> : vector<64x128xf32>
    %36 = tpu.matmul %31, %29, %cst_31 {dimension_numbers = #tpu.dot_dimension_numbers<[1], [0], [0], [1], [0, 0, 1, 1], [], []>} : vector<64x4xf32>, vector<4x128xf32>, vector<64x128xf32> -> vector<64x128xf32>
    %c1_32 = arith.constant 1 : index
    %c0_33 = arith.constant 0 : index
    %c0_34 = arith.constant 0 : index
    %37 = vector.load %arg4[%c1_32, %c0_33, %c0_34] : memref<2x64x1xf32, #tpu.memory_space<vmem>>, vector<1x64x1xf32>
    %38 = vector.shape_cast %37 : vector<1x64x1xf32> to vector<64x1xf32>
    %39 = vector.broadcast %38 : vector<64x1xf32> to vector<64x128xf32>
    %40 = arith.addf %36, %39 : vector<64x128xf32>
    %41 = math.tanh %40 : vector<64x128xf32>
    %cst_35 = arith.constant dense<0.000000e+00> : vector<64x128xf32>
    %42 = tpu.matmul %33, %41, %cst_35 {dimension_numbers = #tpu.dot_dimension_numbers<[1], [0], [0], [1], [0, 0, 1, 1], [], []>} : vector<64x64xf32>, vector<64x128xf32>, vector<64x128xf32> -> vector<64x128xf32>
    %c1_36 = arith.constant 1 : index
    %c0_37 = arith.constant 0 : index
    %c0_38 = arith.constant 0 : index
    %43 = vector.load %arg6[%c1_36, %c0_37, %c0_38] : memref<2x64x1xf32, #tpu.memory_space<vmem>>, vector<1x64x1xf32>
    %44 = vector.shape_cast %43 : vector<1x64x1xf32> to vector<64x1xf32>
    %45 = vector.broadcast %44 : vector<64x1xf32> to vector<64x128xf32>
    %46 = arith.addf %42, %45 : vector<64x128xf32>
    %47 = math.tanh %46 : vector<64x128xf32>
    %cst_39 = arith.constant dense<0.000000e+00> : vector<8x128xf32>
    %48 = tpu.matmul %35, %47, %cst_39 {dimension_numbers = #tpu.dot_dimension_numbers<[1], [0], [0], [1], [0, 0, 1, 1], [], []>} : vector<8x64xf32>, vector<64x128xf32>, vector<8x128xf32> -> vector<8x128xf32>
    %c1_40 = arith.constant 1 : index
    %c0_41 = arith.constant 0 : index
    %c0_42 = arith.constant 0 : index
    %49 = vector.load %arg8[%c1_40, %c0_41, %c0_42] : memref<2x8x1xf32, #tpu.memory_space<vmem>>, vector<1x8x1xf32>
    %50 = vector.shape_cast %49 : vector<1x8x1xf32> to vector<8x1xf32>
    %51 = vector.broadcast %50 : vector<8x1xf32> to vector<8x128xf32>
    %52 = arith.addf %48, %51 : vector<8x128xf32>
    %53 = vector.extract_strided_slice %52 {offsets = [0, 0], sizes = [4, 128], strides = [1, 1]} : vector<8x128xf32> to vector<4x128xf32>
    %54 = vector.extract_strided_slice %52 {offsets = [4, 0], sizes = [4, 128], strides = [1, 1]} : vector<8x128xf32> to vector<4x128xf32>
    %55 = math.exp %54 : vector<4x128xf32>
    %56 = arith.mulf %0, %55 : vector<4x128xf32>
    %57 = arith.addf %53, %56 : vector<4x128xf32>
    %c0_43 = arith.constant 0 : index
    %c0_44 = arith.constant 0 : index
    %58 = vector.load %arg9[%c0_43, %c0_44] : memref<4x128xf32, #tpu.memory_space<vmem>>, vector<4x128xf32>
    tpu.vector_store %arg9[%c0_43, %c0_44], %57 {strides = array<i32>} : memref<4x128xf32, #tpu.memory_space<vmem>>, vector<4x128xf32>,
    %c0_45 = arith.constant 0 : index
    %c0_46 = arith.constant 0 : index
    %59 = vector.load %arg10[%c0_45, %c0_46] : memref<4x128xf32, #tpu.memory_space<vmem>>, vector<4x128xf32>
    tpu.vector_store %arg10[%c0_45, %c0_46], %29 {strides = array<i32>} : memref<4x128xf32, #tpu.memory_space<vmem>>, vector<4x128xf32>,
    %cst_47 = arith.constant dense<0.000000e+00> : vector<128xf32>
    %60 = vector.multi_reduction <add>, %26, %cst_47 [0] : vector<4x128xf32> to vector<128xf32>
    %61 = vector.shape_cast %60 : vector<128xf32> to vector<1x128xf32>
    %cst_48 = arith.constant dense<0.000000e+00> : vector<128xf32>
    %62 = vector.multi_reduction <add>, %54, %cst_48 [0] : vector<4x128xf32> to vector<128xf32>
    %63 = vector.shape_cast %62 : vector<128xf32> to vector<1x128xf32>
    %64 = arith.addf %61, %63 : vector<1x128xf32>
    %c0_49 = arith.constant 0 : index
    %c0_50 = arith.constant 0 : index
    %65 = vector.load %arg11[%c0_49, %c0_50] : memref<1x128xf32, #tpu.memory_space<vmem>>, vector<1x128xf32>
    tpu.vector_store %arg11[%c0_49, %c0_50], %64 {strides = array<i32>} : memref<1x128xf32, #tpu.memory_space<vmem>>, vector<1x128xf32>,
    return
  }
  func.func @transform_0(%arg0: i32) -> (i32, i32) {
    %c0_i32 = arith.constant 0 : i32
    %c0_i32_0 = arith.constant 0 : i32
    return %c0_i32, %arg0 : i32, i32
  }
  func.func @transform_1(%arg0: i32) -> (i32, i32) {
    %c0_i32 = arith.constant 0 : i32
    %c0_i32_0 = arith.constant 0 : i32
    return %c0_i32, %arg0 : i32, i32
  }
  func.func @transform_2(%arg0: i32) -> (i32, i32, i32) {
    %c0_i32 = arith.constant 0 : i32
    %c0_i32_0 = arith.constant 0 : i32
    %c0_i32_1 = arith.constant 0 : i32
    %c0_i32_2 = arith.constant 0 : i32
    return %c0_i32, %c0_i32_0, %c0_i32_1 : i32, i32, i32
  }
  func.func @transform_3(%arg0: i32) -> (i32, i32, i32) {
    %c0_i32 = arith.constant 0 : i32
    %c0_i32_0 = arith.constant 0 : i32
    %c0_i32_1 = arith.constant 0 : i32
    %c0_i32_2 = arith.constant 0 : i32
    return %c0_i32, %c0_i32_0, %c0_i32_1 : i32, i32, i32
  }
  func.func @transform_4(%arg0: i32) -> (i32, i32, i32) {
    %c0_i32 = arith.constant 0 : i32
    %c0_i32_0 = arith.constant 0 : i32
    %c0_i32_1 = arith.constant 0 : i32
    %c0_i32_2 = arith.constant 0 : i32
    return %c0_i32, %c0_i32_0, %c0_i32_1 : i32, i32, i32
  }
  func.func @transform_5(%arg0: i32) -> (i32, i32, i32) {
    %c0_i32 = arith.constant 0 : i32
    %c0_i32_0 = arith.constant 0 : i32
    %c0_i32_1 = arith.constant 0 : i32
    %c0_i32_2 = arith.constant 0 : i32
    return %c0_i32, %c0_i32_0, %c0_i32_1 : i32, i32, i32
  }
  func.func @transform_6(%arg0: i32) -> (i32, i32, i32) {
    %c0_i32 = arith.constant 0 : i32
    %c0_i32_0 = arith.constant 0 : i32
    %c0_i32_1 = arith.constant 0 : i32
    %c0_i32_2 = arith.constant 0 : i32
    return %c0_i32, %c0_i32_0, %c0_i32_1 : i32, i32, i32
  }
  func.func @transform_7(%arg0: i32) -> (i32, i32, i32) {
    %c0_i32 = arith.constant 0 : i32
    %c0_i32_0 = arith.constant 0 : i32
    %c0_i32_1 = arith.constant 0 : i32
    %c0_i32_2 = arith.constant 0 : i32
    return %c0_i32, %c0_i32_0, %c0_i32_1 : i32, i32, i32
  }
  func.func @transform_8(%arg0: i32) -> (i32, i32) {
    %c0_i32 = arith.constant 0 : i32
    %c0_i32_0 = arith.constant 0 : i32
    return %c0_i32, %arg0 : i32, i32
  }
  func.func @transform_9(%arg0: i32) -> (i32, i32) {
    %c0_i32 = arith.constant 0 : i32
    %c0_i32_0 = arith.constant 0 : i32
    return %c0_i32, %arg0 : i32, i32
  }
  func.func @transform_10(%arg0: i32) -> (i32, i32) {
    %c0_i32 = arith.constant 0 : i32
    %c0_i32_0 = arith.constant 0 : i32
    return %c0_i32, %arg0 : i32, i32
  }
}

</mosaic_0001>

<llo_original>
// kernel: tpu_custom_call.1
$region0: #{tpu_custom_call.1}
  #allocation0 [shape = 'u32[]', space=smem, size = 0x4, offset = 0x4, fixed_abs, tag = 'smem constant byte address 0x4 - core index']
  #allocation1 [shape = 'u32[144,128]{1,0:T(1,128)}', space=vmem, size = 0x12000, scoped, tag = 'internal scratch']
  %s0 = inlined_call_operand.vmem [shape: f32[4,128], index: 0, kind: input, shape index: {}]
  %s1 = inlined_call_operand.vmem [shape: f32[4,128], index: 1, kind: input, shape index: {}]
  %s2 = inlined_call_operand.vmem [shape: f32[2,64,4], index: 2, kind: input, shape index: {}]
  %s3 = inlined_call_operand.vmem [shape: f32[2,64,1], index: 3, kind: input, shape index: {}]
  %s4 = inlined_call_operand.vmem [shape: f32[2,64,64], index: 4, kind: input, shape index: {}]
  %s5 = inlined_call_operand.vmem [shape: f32[2,64,1], index: 5, kind: input, shape index: {}]
  %s6 = inlined_call_operand.vmem [shape: f32[2,8,64], index: 6, kind: input, shape index: {}]
  %s7 = inlined_call_operand.vmem [shape: f32[2,8,1], index: 7, kind: input, shape index: {}]
  %s8 = inlined_call_operand.hbm [shape: f32[4,128], index: 8, kind: output, shape index: {0}]
  %s9 = inlined_call_operand.hbm [shape: f32[4,128], index: 9, kind: output, shape index: {1}]
  %s10 = inlined_call_operand.hbm [shape: f32[1,128], index: 10, kind: output, shape index: {2}]
  %11 = xla_tuple %s8, %s9, %s10
  %s12 = sld [smem:[#allocation0]]
  $region58: #{tpu_custom_call.1} parent=0
    _
  %s14 = ssub.s32 1, %s12
  %s15 = scalar_select 0, %s14, %s12
  $region1: #{tpu_custom_call.1} parent=0
    #allocation2 [shape = 'u8[2048]{0}', space=vmem, size = 0x800, scoped, tag = 'output window, operand 0, single buffered']
    #allocation3 [shape = 's32[1]{0}', space=sflag, size = 0x4, scoped, tag = 'scoped memory for tpu_custom_call.1']
    #allocation4 [shape = 'u8[2048]{0}', space=vmem, size = 0x800, scoped, tag = 'output window, operand 1, single buffered']
    #allocation5 [shape = 's32[1]{0}', space=sflag, size = 0x4, scoped, tag = 'scoped memory for tpu_custom_call.1']
    #allocation6 [shape = 'u8[512]{0}', space=vmem, size = 0x400, scoped, tag = 'output window, operand 2, single buffered']
    %16 = vsyncpa [#allocation3], 0
    %17 = vsyncpa [#allocation5], 0
    // Predicated region
    $region2: #{tpu_custom_call.1} parent=1 // pred_check
      _
    $region3: #{tpu_custom_call.1} parent=1 // pred_check_branch
      %19 = sbr.rel (0) target = $region5
    $region4: #{tpu_custom_call.1} parent=1 // pred_region
      _
    $region5: #{tpu_custom_call.1} parent=1 // pred_fallthru
      _
    // Predicated region
    $region6: #{tpu_custom_call.1} parent=1 // pred_check
      _
    $region7: #{tpu_custom_call.1} parent=1 // pred_check_branch
      %21 = sbr.rel (0) target = $region9
    $region8: #{tpu_custom_call.1} parent=1 // pred_region
      _
    $region9: #{tpu_custom_call.1} parent=1 // pred_fallthru
      _
    // Predicated region
    $region10: #{tpu_custom_call.1} parent=1 // pred_check
      _
    $region11: #{tpu_custom_call.1} parent=1 // pred_check_branch
      %23 = sbr.rel (0) target = $region13
    $region12: #{tpu_custom_call.1} parent=1 // pred_region
      _
    $region13: #{tpu_custom_call.1} parent=1 // pred_fallthru
      _
    // Predicated region
    $region14: #{tpu_custom_call.1} parent=1 // pred_check
      _
    $region15: #{tpu_custom_call.1} parent=1 // pred_check_branch
      %25 = sbr.rel (0) target = $region17
    $region16: #{tpu_custom_call.1} parent=1 // pred_region
      _
    $region17: #{tpu_custom_call.1} parent=1 // pred_fallthru
      _
    // Predicated region
    $region18: #{tpu_custom_call.1} parent=1 // pred_check
      _
    $region19: #{tpu_custom_call.1} parent=1 // pred_check_branch
      %27 = sbr.rel (0) target = $region21
    $region20: #{tpu_custom_call.1} parent=1 // pred_region
      _
    $region21: #{tpu_custom_call.1} parent=1 // pred_fallthru
      _
    // Predicated region
    $region22: #{tpu_custom_call.1} parent=1 // pred_check
      _
    $region23: #{tpu_custom_call.1} parent=1 // pred_check_branch
      %29 = sbr.rel (0) target = $region25
    $region24: #{tpu_custom_call.1} parent=1 // pred_region
      _
    $region25: #{tpu_custom_call.1} parent=1 // pred_fallthru
      _
    // Predicated region
    $region26: #{tpu_custom_call.1} parent=1 // pred_check
      _
    $region27: #{tpu_custom_call.1} parent=1 // pred_check_branch
      %31 = sbr.rel (0) target = $region29
    $region28: #{tpu_custom_call.1} parent=1 // pred_region
      _
    $region29: #{tpu_custom_call.1} parent=1 // pred_fallthru
      _
    // Predicated region
    $region30: #{tpu_custom_call.1} parent=1 // pred_check
      _
    $region31: #{tpu_custom_call.1} parent=1 // pred_check_branch
      %33 = sbr.rel (0) target = $region33
    $region32: #{tpu_custom_call.1} parent=1 // pred_region
      _
    $region33: #{tpu_custom_call.1} parent=1 // pred_fallthru
      _
    %v34 = vld [vmem:[%s0] sm:$0xf]
    %v35 = vld [vmem:[%s1] sm:$0xf]
    %v36 = vld [vmem:[%s2] sm:$0xff]
    %v37 = vld [vmem:[%s2 + $0x8] sm:$0xff]
    %v38 = vld [vmem:[%s2 + $0x10] sm:$0xff]
    %v39 = vld [vmem:[%s2 + $0x18] sm:$0xff]
    %v40 = vld [vmem:[%s2 + $0x20] sm:$0xff]
    %v41 = vld [vmem:[%s2 + $0x28] sm:$0xff]
    %v42 = vld [vmem:[%s2 + $0x30] sm:$0xff]
    %v43 = vld [vmem:[%s2 + $0x38] sm:$0xff]
    %v44 = vld [vmem:[%s4] sm:$0xff]
    %v45 = vld [vmem:[%s4 + $0x8] sm:$0xff]
    %v46 = vld [vmem:[%s4 + $0x10] sm:$0xff]
    %v47 = vld [vmem:[%s4 + $0x18] sm:$0xff]
    %v48 = vld [vmem:[%s4 + $0x20] sm:$0xff]
    %v49 = vld [vmem:[%s4 + $0x28] sm:$0xff]
    %v50 = vld [vmem:[%s4 + $0x30] sm:$0xff]
    %v51 = vld [vmem:[%s4 + $0x38] sm:$0xff]
    %v52 = vld [vmem:[%s6] sm:$0xff]
    %v53 = vld [vmem:[%s3] sm:$0xff]
    %v54 = vld [vmem:[%s3 + $0x8] sm:$0xff]
    %v55 = vld [vmem:[%s3 + $0x10] sm:$0xff]
    %v56 = vld [vmem:[%s3 + $0x18] sm:$0xff]
    %v57 = vld [vmem:[%s3 + $0x20] sm:$0xff]
    %v58 = vld [vmem:[%s3 + $0x28] sm:$0xff]
    %v59 = vld [vmem:[%s3 + $0x30] sm:$0xff]
    %v60 = vld [vmem:[%s3 + $0x38] sm:$0xff]
    %62 = vset.pattern.permute.xlu0 0
    %63 = vperm.xlu0 %62, %v53
    %v64 = vpop.permute.xlu0 %63
    %67 = vset.pattern.permute.xlu0 0
    %68 = vperm.xlu0 %67, %v54
    %v69 = vpop.permute.xlu0 %68
    %72 = vset.pattern.permute.xlu0 0
    %73 = vperm.xlu0 %72, %v55
    %v74 = vpop.permute.xlu0 %73
    %77 = vset.pattern.permute.xlu0 0
    %78 = vperm.xlu0 %77, %v56
    %v79 = vpop.permute.xlu0 %78
    %82 = vset.pattern.permute.xlu0 0
    %83 = vperm.xlu0 %82, %v57
    %v84 = vpop.permute.xlu0 %83
    %87 = vset.pattern.permute.xlu0 0
    %88 = vperm.xlu0 %87, %v58
    %v89 = vpop.permute.xlu0 %88
    %92 = vset.pattern.permute.xlu0 0
    %93 = vperm.xlu0 %92, %v59
    %v94 = vpop.permute.xlu0 %93
    %97 = vset.pattern.permute.xlu0 0
    %98 = vperm.xlu0 %97, %v60
    %v99 = vpop.permute.xlu0 %98
    %vm101 = vcmask 31744
    %v103 = vsel %vm101, %v36, 0
    %v106 = vsel %vm101, %v37, 0
    %v109 = vsel %vm101, %v38, 0
    %v112 = vsel %vm101, %v39, 0
    %v115 = vsel %vm101, %v40, 0
    %v118 = vsel %vm101, %v41, 0
    %v121 = vsel %vm101, %v42, 0
    %v124 = vsel %vm101, %v43, 0
    %vm126 = vcmask 1043456
    %v128 = vsel %vm126, %v34, 0
    %130 = vmatprep.subr.mxu0 0.0
    %131 = vmatpush1.msra.mxu0 %v128
    %132 = vmatprep.subr.mxu0 0.0
    %133 = vmatpush1.msra.mxu0 0.0
    %134 = vmatprep.subr.mxu0 0.0
    %135 = vmatpush1.msra.mxu0 0.0
    %136 = vmatprep.subr.mxu0 0.0
    %137 = vmatpush1.msra.mxu0 0.0
    %138 = vmatprep.subr.mxu0 0.0
    %139 = vmatpush1.msra.mxu0 0.0
    %140 = vmatprep.subr.mxu0 0.0
    %141 = vmatpush1.msra.mxu0 0.0
    %142 = vmatprep.subr.mxu0 0.0
    %143 = vmatpush1.msra.mxu0 0.0
    %144 = vmatprep.subr.mxu0 0.0
    %145 = vmatpush1.msra.mxu0 0.0
    %146 = vmatprep.subr.mxu0 0.0
    %147 = vmatpush1.msra.mxu0 0.0
    %148 = vmatprep.subr.mxu0 0.0
    %149 = vmatpush1.msra.mxu0 0.0
    %150 = vmatprep.subr.mxu0 0.0
    %151 = vmatpush1.msra.mxu0 0.0
    %152 = vmatprep.subr.mxu0 0.0
    %153 = vmatpush1.msra.mxu0 0.0
    %154 = vmatprep.subr.mxu0 0.0
    %155 = vmatpush1.msra.mxu0 0.0
    %156 = vmatprep.subr.mxu0 0.0
    %157 = vmatpush1.msra.mxu0 0.0
    %158 = vmatprep.subr.mxu0 0.0
    %159 = vmatpush1.msra.mxu0 0.0
    %160 = vmatprep.subr.mxu0 0.0
    %161 = vmatpush1.msra.mxu0 0.0
    %162 = vmatprep.subr.mxu0 0.0
    %163 = vmatpush1.msra.mxu0 0.0
    %164 = vmatprep.subr.mxu0 0.0
    %165 = vmatpush1.msra.mxu0 0.0
    %166 = vmatprep.subr.mxu0 0.0
    %167 = vmatpush1.msra.mxu0 0.0
    %168 = vmatprep.subr.mxu0 0.0
    %169 = vmatpush1.msra.mxu0 0.0
    %170 = vmatprep.subr.mxu0 0.0
    %171 = vmatpush1.msra.mxu0 0.0
    %172 = vmatprep.subr.mxu0 0.0
    %173 = vmatpush1.msra.mxu0 0.0
    %174 = vmatprep.subr.mxu0 0.0
    %175 = vmatpush1.msra.mxu0 0.0
    %176 = vmatprep.subr.mxu0 0.0
    %177 = vmatpush1.msra.mxu0 0.0
    %178 = vmatprep.subr.mxu0 0.0
    %179 = vmatpush1.msra.mxu0 0.0
    %180 = vmatprep.subr.mxu0 0.0
    %181 = vmatpush1.msra.mxu0 0.0
    %182 = vmatprep.subr.mxu0 0.0
    %183 = vmatpush1.msra.mxu0 0.0
    %184 = vmatprep.subr.mxu0 0.0
    %185 = vmatpush1.msra.mxu0 0.0
    %186 = vmatprep.subr.mxu0 0.0
    %187 = vmatpush1.msra.mxu0 0.0
    %188 = vmatprep.subr.mxu0 0.0
    %189 = vmatpush1.msra.mxu0 0.0
    %190 = vmatprep.subr.mxu0 0.0
    %191 = vmatpush1.msra.mxu0 0.0
    %192 = vmatprep.subr.mxu0 0.0
    %193 = vmatpush1.msra.mxu0 0.0
    %194 = vmatprep.mubr.f32.mxu0 0.0
    %195 = vmatmul.mubr.f32.gmra.mrb[0].mxu0 %v103
    %v196 = vpop.f32.mrb[0].mxu0
    %v197 = vadd.f32 %v64, %v196
    %v198 = vpop.f32.mrb[0].mxu0
    %199 = vmatprep.mubr.f32.mxu0 0.0
    %200 = vmatmul.mubr.f32.gmra.mrb[0].mxu0 %v106
    %v201 = vpop.f32.mrb[0].mxu0
    %v202 = vadd.f32 %v69, %v201
    %v203 = vpop.f32.mrb[0].mxu0
    %204 = vmatprep.mubr.f32.mxu0 0.0
    %205 = vmatmul.mubr.f32.gmra.mrb[0].mxu0 %v109
    %v206 = vpop.f32.mrb[0].mxu0
    %v207 = vadd.f32 %v74, %v206
    %v208 = vpop.f32.mrb[0].mxu0
    %209 = vmatprep.mubr.f32.mxu0 0.0
    %210 = vmatmul.mubr.f32.gmra.mrb[0].mxu0 %v112
    %v211 = vpop.f32.mrb[0].mxu0
    %v212 = vadd.f32 %v79, %v211
    %v213 = vpop.f32.mrb[0].mxu0
    %214 = vmatprep.mubr.f32.mxu0 0.0
    %215 = vmatmul.mubr.f32.gmra.mrb[0].mxu0 %v115
    %v216 = vpop.f32.mrb[0].mxu0
    %v217 = vadd.f32 %v84, %v216
    %v218 = vpop.f32.mrb[0].mxu0
    %219 = vmatprep.mubr.f32.mxu0 0.0
    %220 = vmatmul.mubr.f32.gmra.mrb[0].mxu0 %v118
    %v221 = vpop.f32.mrb[0].mxu0
    %v222 = vadd.f32 %v89, %v221
    %v223 = vpop.f32.mrb[0].mxu0
    %224 = vmatprep.mubr.f32.mxu0 0.0
    %225 = vmatmul.mubr.f32.gmra.mrb[0].mxu0 %v121
    %v226 = vpop.f32.mrb[0].mxu0
    %v227 = vadd.f32 %v94, %v226
    %v228 = vpop.f32.mrb[0].mxu0
    %229 = vmatprep.mubr.f32.mxu0 0.0
    %230 = vmatmul.mubr.f32.gmra.mrb[0].mxu0 %v124
    %v231 = vpop.f32.mrb[0].mxu0
    %v232 = vadd.f32 %v99, %v231
    %v233 = vpop.f32.mrb[0].mxu0
    %234 = vdwg.mxu0
    %v235 = vtanh.pop %v197
    %v236 = vtanh.pop %v202
    %v237 = vtanh.pop %v207
    %v238 = vtanh.pop %v212
    %v239 = vtanh.pop %v217
    %v240 = vtanh.pop %v222
    %v241 = vtanh.pop %v227
    %v242 = vtanh.pop %v232
    %v243 = vld [vmem:[%s5] sm:$0xff]
    %v244 = vld [vmem:[%s5 + $0x8] sm:$0xff]
    %v245 = vld [vmem:[%s5 + $0x10] sm:$0xff]
    %v246 = vld [vmem:[%s5 + $0x18] sm:$0xff]
    %v247 = vld [vmem:[%s5 + $0x20] sm:$0xff]
    %v248 = vld [vmem:[%s5 + $0x28] sm:$0xff]
    %v249 = vld [vmem:[%s5 + $0x30] sm:$0xff]
    %v250 = vld [vmem:[%s5 + $0x38] sm:$0xff]
    %252 = vset.pattern.permute.xlu0 0
    %253 = vperm.xlu0 %252, %v243
    %v254 = vpop.permute.xlu0 %253
    %257 = vset.pattern.permute.xlu0 0
    %258 = vperm.xlu0 %257, %v244
    %v259 = vpop.permute.xlu0 %258
    %262 = vset.pattern.permute.xlu0 0
    %263 = vperm.xlu0 %262, %v245
    %v264 = vpop.permute.xlu0 %263
    %267 = vset.pattern.permute.xlu0 0
    %268 = vperm.xlu0 %267, %v246
    %v269 = vpop.permute.xlu0 %268
    %272 = vset.pattern.permute.xlu0 0
    %273 = vperm.xlu0 %272, %v247
    %v274 = vpop.permute.xlu0 %273
    %277 = vset.pattern.permute.xlu0 0
    %278 = vperm.xlu0 %277, %v248
    %v279 = vpop.permute.xlu0 %278
    %282 = vset.pattern.permute.xlu0 0
    %283 = vperm.xlu0 %282, %v249
    %v284 = vpop.permute.xlu0 %283
    %287 = vset.pattern.permute.xlu0 0
    %288 = vperm.xlu0 %287, %v250
    %v289 = vpop.permute.xlu0 %288
    %vm291 = vcmask 523264
    %v293 = vsel %vm291, %v44, 0
    %v296 = vsel %vm291, %v45, 0
    %v299 = vsel %vm291, %v46, 0
    %v302 = vsel %vm291, %v47, 0
    %v305 = vsel %vm291, %v48, 0
    %v308 = vsel %vm291, %v49, 0
    %v311 = vsel %vm291, %v50, 0
    %v314 = vsel %vm291, %v51, 0
    %316 = vmatprep.subr.mxu0 0.0
    %317 = vmatpush1.msra.mxu0 %v235
    %318 = vmatprep.subr.mxu0 0.0
    %319 = vmatpush1.msra.mxu0 %v236
    %320 = vmatprep.subr.mxu0 0.0
    %321 = vmatpush1.msra.mxu0 %v237
    %322 = vmatprep.subr.mxu0 0.0
    %323 = vmatpush1.msra.mxu0 %v238
    %324 = vmatprep.subr.mxu0 0.0
    %325 = vmatpush1.msra.mxu0 %v239
    %326 = vmatprep.subr.mxu0 0.0
    %327 = vmatpush1.msra.mxu0 %v240
    %328 = vmatprep.subr.mxu0 0.0
    %329 = vmatpush1.msra.mxu0 %v241
    %330 = vmatprep.subr.mxu0 0.0
    %331 = vmatpush1.msra.mxu0 %v242
    %332 = vmatprep.subr.mxu0 0.0
    %333 = vmatpush1.msra.mxu0 0.0
    %334 = vmatprep.subr.mxu0 0.0
    %335 = vmatpush1.msra.mxu0 0.0
    %336 = vmatprep.subr.mxu0 0.0
    %337 = vmatpush1.msra.mxu0 0.0
    %338 = vmatprep.subr.mxu0 0.0
    %339 = vmatpush1.msra.mxu0 0.0
    %340 = vmatprep.subr.mxu0 0.0
    %341 = vmatpush1.msra.mxu0 0.0
    %342 = vmatprep.subr.mxu0 0.0
    %343 = vmatpush1.msra.mxu0 0.0
    %344 = vmatprep.subr.mxu0 0.0
    %345 = vmatpush1.msra.mxu0 0.0
    %346 = vmatprep.subr.mxu0 0.0
    %347 = vmatpush1.msra.mxu0 0.0
    %348 = vmatprep.subr.mxu0 0.0
    %349 = vmatpush1.msra.mxu0 0.0
    %350 = vmatprep.subr.mxu0 0.0
    %351 = vmatpush1.msra.mxu0 0.0
    %352 = vmatprep.subr.mxu0 0.0
    %353 = vmatpush1.msra.mxu0 0.0
    %354 = vmatprep.subr.mxu0 0.0
    %355 = vmatpush1.msra.mxu0 0.0
    %356 = vmatprep.subr.mxu0 0.0
    %357 = vmatpush1.msra.mxu0 0.0
    %358 = vmatprep.subr.mxu0 0.0
    %359 = vmatpush1.msra.mxu0 0.0
    %360 = vmatprep.subr.mxu0 0.0
    %361 = vmatpush1.msra.mxu0 0.0
    %362 = vmatprep.subr.mxu0 0.0
    %363 = vmatpush1.msra.mxu0 0.0
    %364 = vmatprep.subr.mxu0 0.0
    %365 = vmatpush1.msra.mxu0 0.0
    %366 = vmatprep.subr.mxu0 0.0
    %367 = vmatpush1.msra.mxu0 0.0
    %368 = vmatprep.subr.mxu0 0.0
    %369 = vmatpush1.msra.mxu0 0.0
    %370 = vmatprep.subr.mxu0 0.0
    %371 = vmatpush1.msra.mxu0 0.0
    %372 = vmatprep.subr.mxu0 0.0
    %373 = vmatpush1.msra.mxu0 0.0
    %374 = vmatprep.subr.mxu0 0.0
    %375 = vmatpush1.msra.mxu0 0.0
    %376 = vmatprep.subr.mxu0 0.0
    %377 = vmatpush1.msra.mxu0 0.0
    %378 = vmatprep.subr.mxu0 0.0
    %379 = vmatpush1.msra.mxu0 0.0
    %380 = vmatprep.mubr.f32.mxu0 0.0
    %381 = vmatmul.mubr.f32.gmra.mrb[0].mxu0 %v293
    %v382 = vpop.f32.mrb[0].mxu0
    %v383 = vadd.f32 %v254, %v382
    %v384 = vpop.f32.mrb[0].mxu0
    %385 = vmatprep.mubr.f32.mxu0 0.0
    %386 = vmatmul.mubr.f32.gmra.mrb[0].mxu0 %v296
    %v387 = vpop.f32.mrb[0].mxu0
    %v388 = vadd.f32 %v259, %v387
    %v389 = vpop.f32.mrb[0].mxu0
    %390 = vmatprep.mubr.f32.mxu0 0.0
    %391 = vmatmul.mubr.f32.gmra.mrb[0].mxu0 %v299
    %v392 = vpop.f32.mrb[0].mxu0
    %v393 = vadd.f32 %v264, %v392
    %v394 = vpop.f32.mrb[0].mxu0
    %395 = vmatprep.mubr.f32.mxu0 0.0
    %396 = vmatmul.mubr.f32.gmra.mrb[0].mxu0 %v302
    %v397 = vpop.f32.mrb[0].mxu0
    %v398 = vadd.f32 %v269, %v397
    %v399 = vpop.f32.mrb[0].mxu0
    %400 = vmatprep.mubr.f32.mxu0 0.0
    %401 = vmatmul.mubr.f32.gmra.mrb[0].mxu0 %v305
    %v402 = vpop.f32.mrb[0].mxu0
    %v403 = vadd.f32 %v274, %v402
    %v404 = vpop.f32.mrb[0].mxu0
    %405 = vmatprep.mubr.f32.mxu0 0.0
    %406 = vmatmul.mubr.f32.gmra.mrb[0].mxu0 %v308
    %v407 = vpop.f32.mrb[0].mxu0
    %v408 = vadd.f32 %v279, %v407
    %v409 = vpop.f32.mrb[0].mxu0
    %410 = vmatprep.mubr.f32.mxu0 0.0
    %411 = vmatmul.mubr.f32.gmra.mrb[0].mxu0 %v311
    %v412 = vpop.f32.mrb[0].mxu0
    %v413 = vadd.f32 %v284, %v412
    %v414 = vpop.f32.mrb[0].mxu0
    %415 = vmatprep.mubr.f32.mxu0 0.0
    %416 = vmatmul.mubr.f32.gmra.mrb[0].mxu0 %v314
    %v417 = vpop.f32.mrb[0].mxu0
    %v418 = vadd.f32 %v289, %v417
    %v419 = vpop.f32.mrb[0].mxu0
    %420 = vdwg.mxu0
    %v421 = vtanh.pop %v383
    %v422 = vtanh.pop %v388
    %v423 = vtanh.pop %v393
    %v424 = vtanh.pop %v398
    %v425 = vtanh.pop %v403
    %v426 = vtanh.pop %v408
    %v427 = vtanh.pop %v413
    %v428 = vtanh.pop %v418
    %v429 = vld [vmem:[%s7] sm:$0xff]
    %431 = vset.pattern.permute.xlu0 0
    %432 = vperm.xlu0 %431, %v429
    %v433 = vpop.permute.xlu0 %432
    %v436 = vsel %vm291, %v52, 0
    %438 = vmatprep.subr.mxu0 0.0
    %439 = vmatpush1.msra.mxu0 %v421
    %440 = vmatprep.subr.mxu0 0.0
    %441 = vmatpush1.msra.mxu0 %v422
    %442 = vmatprep.subr.mxu0 0.0
    %443 = vmatpush1.msra.mxu0 %v423
    %444 = vmatprep.subr.mxu0 0.0
    %445 = vmatpush1.msra.mxu0 %v424
    %446 = vmatprep.subr.mxu0 0.0
    %447 = vmatpush1.msra.mxu0 %v425
    %448 = vmatprep.subr.mxu0 0.0
    %449 = vmatpush1.msra.mxu0 %v426
    %450 = vmatprep.subr.mxu0 0.0
    %451 = vmatpush1.msra.mxu0 %v427
    %452 = vmatprep.subr.mxu0 0.0
    %453 = vmatpush1.msra.mxu0 %v428
    %454 = vmatprep.subr.mxu0 0.0
    %455 = vmatpush1.msra.mxu0 0.0
    %456 = vmatprep.subr.mxu0 0.0
    %457 = vmatpush1.msra.mxu0 0.0
    %458 = vmatprep.subr.mxu0 0.0
    %459 = vmatpush1.msra.mxu0 0.0
    %460 = vmatprep.subr.mxu0 0.0
    %461 = vmatpush1.msra.mxu0 0.0
    %462 = vmatprep.subr.mxu0 0.0
    %463 = vmatpush1.msra.mxu0 0.0
    %464 = vmatprep.subr.mxu0 0.0
    %465 = vmatpush1.msra.mxu0 0.0
    %466 = vmatprep.subr.mxu0 0.0
    %467 = vmatpush1.msra.mxu0 0.0
    %468 = vmatprep.subr.mxu0 0.0
    %469 = vmatpush1.msra.mxu0 0.0
    %470 = vmatprep.subr.mxu0 0.0
    %471 = vmatpush1.msra.mxu0 0.0
    %472 = vmatprep.subr.mxu0 0.0
    %473 = vmatpush1.msra.mxu0 0.0
    %474 = vmatprep.subr.mxu0 0.0
    %475 = vmatpush1.msra.mxu0 0.0
    %476 = vmatprep.subr.mxu0 0.0
    %477 = vmatpush1.msra.mxu0 0.0
    %478 = vmatprep.subr.mxu0 0.0
    %479 = vmatpush1.msra.mxu0 0.0
    %480 = vmatprep.subr.mxu0 0.0
    %481 = vmatpush1.msra.mxu0 0.0
    %482 = vmatprep.subr.mxu0 0.0
    %483 = vmatpush1.msra.mxu0 0.0
    %484 = vmatprep.subr.mxu0 0.0
    %485 = vmatpush1.msra.mxu0 0.0
    %486 = vmatprep.subr.mxu0 0.0
    %487 = vmatpush1.msra.mxu0 0.0
    %488 = vmatprep.subr.mxu0 0.0
    %489 = vmatpush1.msra.mxu0 0.0
    %490 = vmatprep.subr.mxu0 0.0
    %491 = vmatpush1.msra.mxu0 0.0
    %492 = vmatprep.subr.mxu0 0.0
    %493 = vmatpush1.msra.mxu0 0.0
    %494 = vmatprep.subr.mxu0 0.0
    %495 = vmatpush1.msra.mxu0 0.0
    %496 = vmatprep.subr.mxu0 0.0
    %497 = vmatpush1.msra.mxu0 0.0
    %498 = vmatprep.subr.mxu0 0.0
    %499 = vmatpush1.msra.mxu0 0.0
    %500 = vmatprep.subr.mxu0 0.0
    %501 = vmatpush1.msra.mxu0 0.0
    %502 = vmatprep.mubr.f32.mxu0 0.0
    %503 = vmatmul.mubr.f32.gmra.mrb[0].mxu0 %v436
    %v504 = vpop.f32.mrb[0].mxu0
    %v505 = vadd.f32 %v433, %v504
    %v506 = vpop.f32.mrb[0].mxu0
    %507 = vdwg.mxu0
    %v508 = vmul.f32 %v505, 1.442695
    %v509 = vpow.pop %v508
    %v511 = vrot.slane %v509, 4
    %v513 = vmul.f32 %v35, %v511
    %v514 = vadd.f32 %v505, %v513
    %s515 = scalar_lea.vmem %s2, 64
    %v516 = vld [vmem:[%s515] sm:$0xff]
    %v517 = vld [vmem:[%s515 + $0x8] sm:$0xff]
    %v518 = vld [vmem:[%s515 + $0x10] sm:$0xff]
    %v519 = vld [vmem:[%s515 + $0x18] sm:$0xff]
    %v520 = vld [vmem:[%s515 + $0x20] sm:$0xff]
    %v521 = vld [vmem:[%s515 + $0x28] sm:$0xff]
    %v522 = vld [vmem:[%s515 + $0x30] sm:$0xff]
    %v523 = vld [vmem:[%s515 + $0x38] sm:$0xff]
    %s524 = scalar_lea.vmem %s4, 64
    %v525 = vld [vmem:[%s524] sm:$0xff]
    %v526 = vld [vmem:[%s524 + $0x8] sm:$0xff]
    %v527 = vld [vmem:[%s524 + $0x10] sm:$0xff]
    %v528 = vld [vmem:[%s524 + $0x18] sm:$0xff]
    %v529 = vld [vmem:[%s524 + $0x20] sm:$0xff]
    %v530 = vld [vmem:[%s524 + $0x28] sm:$0xff]
    %v531 = vld [vmem:[%s524 + $0x30] sm:$0xff]
    %v532 = vld [vmem:[%s524 + $0x38] sm:$0xff]
    %s533 = scalar_lea.vmem %s6, 8
    %v534 = vld [vmem:[%s533] sm:$0xff]
    %s535 = scalar_lea.vmem %s3, 64
    %v536 = vld [vmem:[%s535] sm:$0xff]
    %v537 = vld [vmem:[%s535 + $0x8] sm:$0xff]
    %v538 = vld [vmem:[%s535 + $0x10] sm:$0xff]
    %v539 = vld [vmem:[%s535 + $0x18] sm:$0xff]
    %v540 = vld [vmem:[%s535 + $0x20] sm:$0xff]
    %v541 = vld [vmem:[%s535 + $0x28] sm:$0xff]
    %v542 = vld [vmem:[%s535 + $0x30] sm:$0xff]
    %v543 = vld [vmem:[%s535 + $0x38] sm:$0xff]
    %545 = vset.pattern.permute.xlu0 0
    %546 = vperm.xlu0 %545, %v536
    %v547 = vpop.permute.xlu0 %546
    %550 = vset.pattern.permute.xlu0 0
    %551 = vperm.xlu0 %550, %v537
    %v552 = vpop.permute.xlu0 %551
    %555 = vset.pattern.permute.xlu0 0
    %556 = vperm.xlu0 %555, %v538
    %v557 = vpop.permute.xlu0 %556
    %560 = vset.pattern.permute.xlu0 0
    %561 = vperm.xlu0 %560, %v539
    %v562 = vpop.permute.xlu0 %561
    %565 = vset.pattern.permute.xlu0 0
    %566 = vperm.xlu0 %565, %v540
    %v567 = vpop.permute.xlu0 %566
    %570 = vset.pattern.permute.xlu0 0
    %571 = vperm.xlu0 %570, %v541
    %v572 = vpop.permute.xlu0 %571
    %575 = vset.pattern.permute.xlu0 0
    %576 = vperm.xlu0 %575, %v542
    %v577 = vpop.permute.xlu0 %576
    %580 = vset.pattern.permute.xlu0 0
    %581 = vperm.xlu0 %580, %v543
    %v582 = vpop.permute.xlu0 %581
    %v585 = vsel %vm101, %v516, 0
    %v588 = vsel %vm101, %v517, 0
    %v591 = vsel %vm101, %v518, 0
    %v594 = vsel %vm101, %v519, 0
    %v597 = vsel %vm101, %v520, 0
    %v600 = vsel %vm101, %v521, 0
    %v603 = vsel %vm101, %v522, 0
    %v606 = vsel %vm101, %v523, 0
    %v609 = vsel %vm126, %v514, 0
    %611 = vmatprep.subr.mxu0 0.0
    %612 = vmatpush1.msra.mxu0 %v609
    %613 = vmatprep.subr.mxu0 0.0
    %614 = vmatpush1.msra.mxu0 0.0
    %615 = vmatprep.subr.mxu0 0.0
    %616 = vmatpush1.msra.mxu0 0.0
    %617 = vmatprep.subr.mxu0 0.0
    %618 = vmatpush1.msra.mxu0 0.0
    %619 = vmatprep.subr.mxu0 0.0
    %620 = vmatpush1.msra.mxu0 0.0
    %621 = vmatprep.subr.mxu0 0.0
    %622 = vmatpush1.msra.mxu0 0.0
    %623 = vmatprep.subr.mxu0 0.0
    %624 = vmatpush1.msra.mxu0 0.0
    %625 = vmatprep.subr.mxu0 0.0
    %626 = vmatpush1.msra.mxu0 0.0
    %627 = vmatprep.subr.mxu0 0.0
    %628 = vmatpush1.msra.mxu0 0.0
    %629 = vmatprep.subr.mxu0 0.0
    %630 = vmatpush1.msra.mxu0 0.0
    %631 = vmatprep.subr.mxu0 0.0
    %632 = vmatpush1.msra.mxu0 0.0
    %633 = vmatprep.subr.mxu0 0.0
    %634 = vmatpush1.msra.mxu0 0.0
    %635 = vmatprep.subr.mxu0 0.0
    %636 = vmatpush1.msra.mxu0 0.0
    %637 = vmatprep.subr.mxu0 0.0
    %638 = vmatpush1.msra.mxu0 0.0
    %639 = vmatprep.subr.mxu0 0.0
    %640 = vmatpush1.msra.mxu0 0.0
    %641 = vmatprep.subr.mxu0 0.0
    %642 = vmatpush1.msra.mxu0 0.0
    %643 = vmatprep.subr.mxu0 0.0
    %644 = vmatpush1.msra.mxu0 0.0
    %645 = vmatprep.subr.mxu0 0.0
    %646 = vmatpush1.msra.mxu0 0.0
    %647 = vmatprep.subr.mxu0 0.0
    %648 = vmatpush1.msra.mxu0 0.0
    %649 = vmatprep.subr.mxu0 0.0
    %650 = vmatpush1.msra.mxu0 0.0
    %651 = vmatprep.subr.mxu0 0.0
    %652 = vmatpush1.msra.mxu0 0.0
    %653 = vmatprep.subr.mxu0 0.0
    %654 = vmatpush1.msra.mxu0 0.0
    %655 = vmatprep.subr.mxu0 0.0
    %656 = vmatpush1.msra.mxu0 0.0
    %657 = vmatprep.subr.mxu0 0.0
    %658 = vmatpush1.msra.mxu0 0.0
    %659 = vmatprep.subr.mxu0 0.0
    %660 = vmatpush1.msra.mxu0 0.0
    %661 = vmatprep.subr.mxu0 0.0
    %662 = vmatpush1.msra.mxu0 0.0
    %663 = vmatprep.subr.mxu0 0.0
    %664 = vmatpush1.msra.mxu0 0.0
    %665 = vmatprep.subr.mxu0 0.0
    %666 = vmatpush1.msra.mxu0 0.0
    %667 = vmatprep.subr.mxu0 0.0
    %668 = vmatpush1.msra.mxu0 0.0
    %669 = vmatprep.subr.mxu0 0.0
    %670 = vmatpush1.msra.mxu0 0.0
    %671 = vmatprep.subr.mxu0 0.0
    %672 = vmatpush1.msra.mxu0 0.0
    %673 = vmatprep.subr.mxu0 0.0
    %674 = vmatpush1.msra.mxu0 0.0
    %675 = vmatprep.mubr.f32.mxu0 0.0
    %676 = vmatmul.mubr.f32.gmra.mrb[0].mxu0 %v585
    %v677 = vpop.f32.mrb[0].mxu0
    %v678 = vadd.f32 %v547, %v677
    %v679 = vpop.f32.mrb[0].mxu0
    %680 = vmatprep.mubr.f32.mxu0 0.0
    %681 = vmatmul.mubr.f32.gmra.mrb[0].mxu0 %v588
    %v682 = vpop.f32.mrb[0].mxu0
    %v683 = vadd.f32 %v552, %v682
    %v684 = vpop.f32.mrb[0].mxu0
    %685 = vmatprep.mubr.f32.mxu0 0.0
    %686 = vmatmul.mubr.f32.gmra.mrb[0].mxu0 %v591
    %v687 = vpop.f32.mrb[0].mxu0
    %v688 = vadd.f32 %v557, %v687
    %v689 = vpop.f32.mrb[0].mxu0
    %690 = vmatprep.mubr.f32.mxu0 0.0
    %691 = vmatmul.mubr.f32.gmra.mrb[0].mxu0 %v594
    %v692 = vpop.f32.mrb[0].mxu0
    %v693 = vadd.f32 %v562, %v692
    %v694 = vpop.f32.mrb[0].mxu0
    %695 = vmatprep.mubr.f32.mxu0 0.0
    %696 = vmatmul.mubr.f32.gmra.mrb[0].mxu0 %v597
    %v697 = vpop.f32.mrb[0].mxu0
    %v698 = vadd.f32 %v567, %v697
    %v699 = vpop.f32.mrb[0].mxu0
    %700 = vmatprep.mubr.f32.mxu0 0.0
    %701 = vmatmul.mubr.f32.gmra.mrb[0].mxu0 %v600
    %v702 = vpop.f32.mrb[0].mxu0
    %v703 = vadd.f32 %v572, %v702
    %v704 = vpop.f32.mrb[0].mxu0
    %705 = vmatprep.mubr.f32.mxu0 0.0
    %706 = vmatmul.mubr.f32.gmra.mrb[0].mxu0 %v603
    %v707 = vpop.f32.mrb[0].mxu0
    %v708 = vadd.f32 %v577, %v707
    %v709 = vpop.f32.mrb[0].mxu0
    %710 = vmatprep.mubr.f32.mxu0 0.0
    %711 = vmatmul.mubr.f32.gmra.mrb[0].mxu0 %v606
    %v712 = vpop.f32.mrb[0].mxu0
    %v713 = vadd.f32 %v582, %v712
    %v714 = vpop.f32.mrb[0].mxu0
    %715 = vdwg.mxu0
    %v716 = vtanh.pop %v678
    %v717 = vtanh.pop %v683
    %v718 = vtanh.pop %v688
    %v719 = vtanh.pop %v693
    %v720 = vtanh.pop %v698
    %v721 = vtanh.pop %v703
    %v722 = vtanh.pop %v708
    %v723 = vtanh.pop %v713
    %s724 = scalar_lea.vmem %s5, 64
    %v725 = vld [vmem:[%s724] sm:$0xff]
    %v726 = vld [vmem:[%s724 + $0x8] sm:$0xff]
    %v727 = vld [vmem:[%s724 + $0x10] sm:$0xff]
    %v728 = vld [vmem:[%s724 + $0x18] sm:$0xff]
    %v729 = vld [vmem:[%s724 + $0x20] sm:$0xff]
    %v730 = vld [vmem:[%s724 + $0x28] sm:$0xff]
    %v731 = vld [vmem:[%s724 + $0x30] sm:$0xff]
    %v732 = vld [vmem:[%s724 + $0x38] sm:$0xff]
    %734 = vset.pattern.permute.xlu0 0
    %735 = vperm.xlu0 %734, %v725
    %v736 = vpop.permute.xlu0 %735
    %739 = vset.pattern.permute.xlu0 0
    %740 = vperm.xlu0 %739, %v726
    %v741 = vpop.permute.xlu0 %740
    %744 = vset.pattern.permute.xlu0 0
    %745 = vperm.xlu0 %744, %v727
    %v746 = vpop.permute.xlu0 %745
    %749 = vset.pattern.permute.xlu0 0
    %750 = vperm.xlu0 %749, %v728
    %v751 = vpop.permute.xlu0 %750
    %754 = vset.pattern.permute.xlu0 0
    %755 = vperm.xlu0 %754, %v729
    %v756 = vpop.permute.xlu0 %755
    %759 = vset.pattern.permute.xlu0 0
    %760 = vperm.xlu0 %759, %v730
    %v761 = vpop.permute.xlu0 %760
    %764 = vset.pattern.permute.xlu0 0
    %765 = vperm.xlu0 %764, %v731
    %v766 = vpop.permute.xlu0 %765
    %769 = vset.pattern.permute.xlu0 0
    %770 = vperm.xlu0 %769, %v732
    %v771 = vpop.permute.xlu0 %770
    %v774 = vsel %vm291, %v525, 0
    %v777 = vsel %vm291, %v526, 0
    %v780 = vsel %vm291, %v527, 0
    %v783 = vsel %vm291, %v528, 0
    %v786 = vsel %vm291, %v529, 0
    %v789 = vsel %vm291, %v530, 0
    %v792 = vsel %vm291, %v531, 0
    %v795 = vsel %vm291, %v532, 0
    %797 = vmatprep.subr.mxu0 0.0
    %798 = vmatpush1.msra.mxu0 %v716
    %799 = vmatprep.subr.mxu0 0.0
    %800 = vmatpush1.msra.mxu0 %v717
    %801 = vmatprep.subr.mxu0 0.0
    %802 = vmatpush1.msra.mxu0 %v718
    %803 = vmatprep.subr.mxu0 0.0
    %804 = vmatpush1.msra.mxu0 %v719
    %805 = vmatprep.subr.mxu0 0.0
    %806 = vmatpush1.msra.mxu0 %v720
    %807 = vmatprep.subr.mxu0 0.0
    %808 = vmatpush1.msra.mxu0 %v721
    %809 = vmatprep.subr.mxu0 0.0
    %810 = vmatpush1.msra.mxu0 %v722
    %811 = vmatprep.subr.mxu0 0.0
    %812 = vmatpush1.msra.mxu0 %v723
    %813 = vmatprep.subr.mxu0 0.0
    %814 = vmatpush1.msra.mxu0 0.0
    %815 = vmatprep.subr.mxu0 0.0
    %816 = vmatpush1.msra.mxu0 0.0
    %817 = vmatprep.subr.mxu0 0.0
    %818 = vmatpush1.msra.mxu0 0.0
    %819 = vmatprep.subr.mxu0 0.0
    %820 = vmatpush1.msra.mxu0 0.0
    %821 = vmatprep.subr.mxu0 0.0
    %822 = vmatpush1.msra.mxu0 0.0
    %823 = vmatprep.subr.mxu0 0.0
    %824 = vmatpush1.msra.mxu0 0.0
    %825 = vmatprep.subr.mxu0 0.0
    %826 = vmatpush1.msra.mxu0 0.0
    %827 = vmatprep.subr.mxu0 0.0
    %828 = vmatpush1.msra.mxu0 0.0
    %829 = vmatprep.subr.mxu0 0.0
    %830 = vmatpush1.msra.mxu0 0.0
    %831 = vmatprep.subr.mxu0 0.0
    %832 = vmatpush1.msra.mxu0 0.0
    %833 = vmatprep.subr.mxu0 0.0
    %834 = vmatpush1.msra.mxu0 0.0
    %835 = vmatprep.subr.mxu0 0.0
    %836 = vmatpush1.msra.mxu0 0.0
    %837 = vmatprep.subr.mxu0 0.0
    %838 = vmatpush1.msra.mxu0 0.0
    %839 = vmatprep.subr.mxu0 0.0
    %840 = vmatpush1.msra.mxu0 0.0
    %841 = vmatprep.subr.mxu0 0.0
    %842 = vmatpush1.msra.mxu0 0.0
    %843 = vmatprep.subr.mxu0 0.0
    %844 = vmatpush1.msra.mxu0 0.0
    %845 = vmatprep.subr.mxu0 0.0
    %846 = vmatpush1.msra.mxu0 0.0
    %847 = vmatprep.subr.mxu0 0.0
    %848 = vmatpush1.msra.mxu0 0.0
    %849 = vmatprep.subr.mxu0 0.0
    %850 = vmatpush1.msra.mxu0 0.0
    %851 = vmatprep.subr.mxu0 0.0
    %852 = vmatpush1.msra.mxu0 0.0
    %853 = vmatprep.subr.mxu0 0.0
    %854 = vmatpush1.msra.mxu0 0.0
    %855 = vmatprep.subr.mxu0 0.0
    %856 = vmatpush1.msra.mxu0 0.0
    %857 = vmatprep.subr.mxu0 0.0
    %858 = vmatpush1.msra.mxu0 0.0
    %859 = vmatprep.subr.mxu0 0.0
    %860 = vmatpush1.msra.mxu0 0.0
    %861 = vmatprep.mubr.f32.mxu0 0.0
    %862 = vmatmul.mubr.f32.gmra.mrb[0].mxu0 %v774
    %v863 = vpop.f32.mrb[0].mxu0
    %v864 = vadd.f32 %v736, %v863
    %v865 = vpop.f32.mrb[0].mxu0
    %866 = vmatprep.mubr.f32.mxu0 0.0
    %867 = vmatmul.mubr.f32.gmra.mrb[0].mxu0 %v777
    %v868 = vpop.f32.mrb[0].mxu0
    %v869 = vadd.f32 %v741, %v868
    %v870 = vpop.f32.mrb[0].mxu0
    %871 = vmatprep.mubr.f32.mxu0 0.0
    %872 = vmatmul.mubr.f32.gmra.mrb[0].mxu0 %v780
    %v873 = vpop.f32.mrb[0].mxu0
    %v874 = vadd.f32 %v746, %v873
    %v875 = vpop.f32.mrb[0].mxu0
    %876 = vmatprep.mubr.f32.mxu0 0.0
    %877 = vmatmul.mubr.f32.gmra.mrb[0].mxu0 %v783
    %v878 = vpop.f32.mrb[0].mxu0
    %v879 = vadd.f32 %v751, %v878
    %v880 = vpop.f32.mrb[0].mxu0
    %881 = vmatprep.mubr.f32.mxu0 0.0
    %882 = vmatmul.mubr.f32.gmra.mrb[0].mxu0 %v786
    %v883 = vpop.f32.mrb[0].mxu0
    %v884 = vadd.f32 %v756, %v883
    %v885 = vpop.f32.mrb[0].mxu0
    %886 = vmatprep.mubr.f32.mxu0 0.0
    %887 = vmatmul.mubr.f32.gmra.mrb[0].mxu0 %v789
    %v888 = vpop.f32.mrb[0].mxu0
    %v889 = vadd.f32 %v761, %v888
    %v890 = vpop.f32.mrb[0].mxu0
    %891 = vmatprep.mubr.f32.mxu0 0.0
    %892 = vmatmul.mubr.f32.gmra.mrb[0].mxu0 %v792
    %v893 = vpop.f32.mrb[0].mxu0
    %v894 = vadd.f32 %v766, %v893
    %v895 = vpop.f32.mrb[0].mxu0
    %896 = vmatprep.mubr.f32.mxu0 0.0
    %897 = vmatmul.mubr.f32.gmra.mrb[0].mxu0 %v795
    %v898 = vpop.f32.mrb[0].mxu0
    %v899 = vadd.f32 %v771, %v898
    %v900 = vpop.f32.mrb[0].mxu0
    %901 = vdwg.mxu0
    %v902 = vtanh.pop %v864
    %v903 = vtanh.pop %v869
    %v904 = vtanh.pop %v874
    %v905 = vtanh.pop %v879
    %v906 = vtanh.pop %v884
    %v907 = vtanh.pop %v889
    %v908 = vtanh.pop %v894
    %v909 = vtanh.pop %v899
    %s910 = scalar_lea.vmem %s7, 8
    %v911 = vld [vmem:[%s910] sm:$0xff]
    %913 = vset.pattern.permute.xlu0 0
    %914 = vperm.xlu0 %913, %v911
    %v915 = vpop.permute.xlu0 %914
    %v918 = vsel %vm291, %v534, 0
    %920 = vmatprep.subr.mxu0 0.0
    %921 = vmatpush1.msra.mxu0 %v902
    %922 = vmatprep.subr.mxu0 0.0
    %923 = vmatpush1.msra.mxu0 %v903
    %924 = vmatprep.subr.mxu0 0.0
    %925 = vmatpush1.msra.mxu0 %v904
    %926 = vmatprep.subr.mxu0 0.0
    %927 = vmatpush1.msra.mxu0 %v905
    %928 = vmatprep.subr.mxu0 0.0
    %929 = vmatpush1.msra.mxu0 %v906
    %930 = vmatprep.subr.mxu0 0.0
    %931 = vmatpush1.msra.mxu0 %v907
    %932 = vmatprep.subr.mxu0 0.0
    %933 = vmatpush1.msra.mxu0 %v908
    %934 = vmatprep.subr.mxu0 0.0
    %935 = vmatpush1.msra.mxu0 %v909
    %936 = vmatprep.subr.mxu0 0.0
    %937 = vmatpush1.msra.mxu0 0.0
    %938 = vmatprep.subr.mxu0 0.0
    %939 = vmatpush1.msra.mxu0 0.0
    %940 = vmatprep.subr.mxu0 0.0
    %941 = vmatpush1.msra.mxu0 0.0
    %942 = vmatprep.subr.mxu0 0.0
    %943 = vmatpush1.msra.mxu0 0.0
    %944 = vmatprep.subr.mxu0 0.0
    %945 = vmatpush1.msra.mxu0 0.0
    %946 = vmatprep.subr.mxu0 0.0
    %947 = vmatpush1.msra.mxu0 0.0
    %948 = vmatprep.subr.mxu0 0.0
    %949 = vmatpush1.msra.mxu0 0.0
    %950 = vmatprep.subr.mxu0 0.0
    %951 = vmatpush1.msra.mxu0 0.0
    %952 = vmatprep.subr.mxu0 0.0
    %953 = vmatpush1.msra.mxu0 0.0
    %954 = vmatprep.subr.mxu0 0.0
    %955 = vmatpush1.msra.mxu0 0.0
    %956 = vmatprep.subr.mxu0 0.0
    %957 = vmatpush1.msra.mxu0 0.0
    %958 = vmatprep.subr.mxu0 0.0
    %959 = vmatpush1.msra.mxu0 0.0
    %960 = vmatprep.subr.mxu0 0.0
    %961 = vmatpush1.msra.mxu0 0.0
    %962 = vmatprep.subr.mxu0 0.0
    %963 = vmatpush1.msra.mxu0 0.0
    %964 = vmatprep.subr.mxu0 0.0
    %965 = vmatpush1.msra.mxu0 0.0
    %966 = vmatprep.subr.mxu0 0.0
    %967 = vmatpush1.msra.mxu0 0.0
    %968 = vmatprep.subr.mxu0 0.0
    %969 = vmatpush1.msra.mxu0 0.0
    %970 = vmatprep.subr.mxu0 0.0
    %971 = vmatpush1.msra.mxu0 0.0
    %972 = vmatprep.subr.mxu0 0.0
    %973 = vmatpush1.msra.mxu0 0.0
    %974 = vmatprep.subr.mxu0 0.0
    %975 = vmatpush1.msra.mxu0 0.0
    %976 = vmatprep.subr.mxu0 0.0
    %977 = vmatpush1.msra.mxu0 0.0
    %978 = vmatprep.subr.mxu0 0.0
    %979 = vmatpush1.msra.mxu0 0.0
    %980 = vmatprep.subr.mxu0 0.0
    %981 = vmatpush1.msra.mxu0 0.0
    %982 = vmatprep.subr.mxu0 0.0
    %983 = vmatpush1.msra.mxu0 0.0
    %984 = vmatprep.mubr.f32.mxu0 0.0
    %985 = vmatmul.mubr.f32.gmra.mrb[0].mxu0 %v918
    %v986 = vpop.f32.mrb[0].mxu0
    %v987 = vadd.f32 %v915, %v986
    %v988 = vpop.f32.mrb[0].mxu0
    %989 = vdwg.mxu0
    %v990 = vmul.f32 %v987, 1.442695
    %v991 = vpow.pop %v990
    %v993 = vrot.slane %v991, 4
    %v995 = vmul.f32 %v34, %v993
    %v996 = vadd.f32 %v987, %v995
    %997 = vst [vmem:[#allocation2] sm:$0xf] %v996
    %998 = vst [vmem:[#allocation4] sm:$0xf] %v514
    %v1000 = vrot.slane %v505, 4
    %v1002 = vsel %vm126, %v1000, 0.0
    %v1003 = vrot.slane %v1002, 4
    %v1004 = vadd.f32 %v1002, %v1003
    %v1005 = vrot.slane %v1004, 2
    %v1006 = vadd.f32 %v1004, %v1005
    %v1007 = vrot.slane %v1006, 1
    %v1008 = vadd.f32 %v1006, %v1007
    %v1010 = vrot.slane %v987, 4
    %v1012 = vsel %vm126, %v1010, 0.0
    %v1013 = vrot.slane %v1012, 4
    %v1014 = vadd.f32 %v1012, %v1013
    %v1015 = vrot.slane %v1014, 2
    %v1016 = vadd.f32 %v1014, %v1015
    %v1017 = vrot.slane %v1016, 1
    %v1018 = vadd.f32 %v1016, %v1017
    %v1019 = vadd.f32 %v1008, %v1018
    %1020 = vst [vmem:[#allocation6] sm:$0x1] %v1019
    // Predicated region
    $region34: #{tpu_custom_call.1} parent=1 // pred_check
      _
    $region35: #{tpu_custom_call.1} parent=1 // pred_check_branch
      %1022 = sbr.rel (0) target = $region37
    $region36: #{tpu_custom_call.1} parent=1 // pred_region
      %s1024 = ssub.s32 64, 64
      %1025 = vsyncadd [#allocation3], %s1024
      %s1027 = sshll.u32 [#allocation2], 4
      %s1028 = int_to_ptr.vmem [resolvable:$true] %s1027
      %1030 = dma.vmem_to_hbm [thread:$0]  %s1028, 64, %s8, [#allocation3]
    $region37: #{tpu_custom_call.1} parent=1 // pred_fallthru
      _
    // Predicated region
    $region38: #{tpu_custom_call.1} parent=1 // pred_check
      _
    $region39: #{tpu_custom_call.1} parent=1 // pred_check_branch
      %1032 = sbr.rel (0) target = $region41
    $region40: #{tpu_custom_call.1} parent=1 // pred_region
      %s1034 = ssub.s32 64, 64
      %1035 = vsyncadd [#allocation5], %s1034
      %s1037 = sshll.u32 [#allocation4], 4
      %s1038 = int_to_ptr.vmem [resolvable:$true] %s1037
      %1040 = dma.vmem_to_hbm [thread:$0]  %s1038, 64, %s9, [#allocation5]
    $region41: #{tpu_custom_call.1} parent=1 // pred_fallthru
      _
    // Predicated region
    $region42: #{tpu_custom_call.1} parent=1 // pred_check
      _
    $region43: #{tpu_custom_call.1} parent=1 // pred_check_branch
      %1042 = sbr.rel (0) target = $region45
    $region44: #{tpu_custom_call.1} parent=1 // pred_region
      %s1044 = ssub.s32 16, 16
      %1045 = vsyncadd [#allocation5], %s1044
      %s1047 = sshll.u32 [#allocation6], 4
      %s1048 = int_to_ptr.vmem [resolvable:$true] %s1047
      %1050 = dma.vmem_to_hbm [thread:$0]  %s1048, 16, %s10, [#allocation5]
    $region45: #{tpu_custom_call.1} parent=1 // pred_fallthru
      _
    // Predicated region
    $region46: #{tpu_custom_call.1} parent=1 // pred_check
      _
    $region47: #{tpu_custom_call.1} parent=1 // pred_check_branch
      %1052 = sbr.rel (0) target = $region49
    $region48: #{tpu_custom_call.1} parent=1 // pred_region
      %1053 = dma.done [#allocation3], 64
    $region49: #{tpu_custom_call.1} parent=1 // pred_fallthru
      _
    // Predicated region
    $region50: #{tpu_custom_call.1} parent=1 // pred_check
      _
    $region51: #{tpu_custom_call.1} parent=1 // pred_check_branch
      %1055 = sbr.rel (0) target = $region53
    $region52: #{tpu_custom_call.1} parent=1 // pred_region
      %1056 = dma.done [#allocation5], 64
    $region53: #{tpu_custom_call.1} parent=1 // pred_fallthru
      _
    // Predicated region
    $region54: #{tpu_custom_call.1} parent=1 // pred_check
      _
    $region55: #{tpu_custom_call.1} parent=1 // pred_check_branch
      %1058 = sbr.rel (0) target = $region57
    $region56: #{tpu_custom_call.1} parent=1 // pred_region
      %1059 = dma.done [#allocation5], 16
    $region57: #{tpu_custom_call.1} parent=1 // pred_fallthru
      _
    %1060 = vsyncpa [#allocation3], 1
    %1061 = vsyncpa [#allocation5], 1

</llo_original>
